<compile_context>
chip_gen: v5e
topology: v5e:2x2
jax: 0.10.0
libtpu: 0.0.40
codegen_flags: <defaults>
</compile_context>

<pallas_src>
import jax
import jax.numpy as jnp
from jax.experimental import pallas as pl
from jax.experimental.pallas import tpu as pltpu

LANE = 128      # lane width of a vreg / MXU tile
SUBLANE = 8     # sublane width of a vreg


def _round_up(x, m):
    return ((x + m - 1) // m) * m


def _cdiv(a, b):
    return -(-a // b)


# ---------------------------------------------------------------------------
# Kernel: fused 4-layer MLP (3x ReLU) on one batch tile, weights resident.
# Dots in bf16 (MXU), accumulate + bias + ReLU in f32 (VPU).
# ---------------------------------------------------------------------------
def _mlp_kernel(x_ref, w1_ref, b1_ref, w2_ref, b2_ref, w3_ref, b3_ref,
                wo_ref, bo_ref, o_ref):
    x = x_ref[...].astype(jnp.bfloat16)

    h = jnp.dot(x, w1_ref[...], preferred_element_type=jnp.float32) + b1_ref[...]
    h = jnp.maximum(h, 0.0)

    h = jnp.dot(h.astype(jnp.bfloat16), w2_ref[...],
                preferred_element_type=jnp.float32) + b2_ref[...]
    h = jnp.maximum(h, 0.0)

    h = jnp.dot(h.astype(jnp.bfloat16), w3_ref[...],
                preferred_element_type=jnp.float32) + b3_ref[...]
    h = jnp.maximum(h, 0.0)

    o_ref[...] = (jnp.dot(h.astype(jnp.bfloat16), wo_ref[...],
                          preferred_element_type=jnp.float32)
                  + bo_ref[...]).astype(o_ref.dtype)


# ---------------------------------------------------------------------------
# Parameter handling
# ---------------------------------------------------------------------------
def init_params(key, input_size, hidden_size, output_size):
    """PyTorch-style nn.Linear init (uniform +-1/sqrt(fan_in)).

    Weights are stored transposed: (in_features, out_features) so the kernel
    computes y = x @ W + b (identical math to PyTorch's x @ W.T + b).
    """
    def linear(key, fan_in, fan_out):
        kw, kb = jax.random.split(key)
        bound = 1.0 / jnp.sqrt(jnp.float32(fan_in))
        w = jax.random.uniform(kw, (fan_in, fan_out), jnp.float32, -bound, bound)
        b = jax.random.uniform(kb, (1, fan_out), jnp.float32, -bound, bound)
        return w, b

    k1, k2, k3, k4 = jax.random.split(key, 4)
    w1, b1 = linear(k1, input_size, hidden_size)
    w2, b2 = linear(k2, hidden_size, hidden_size)
    w3, b3 = linear(k3, hidden_size, hidden_size)
    wo, bo = linear(k4, hidden_size, output_size)
    return dict(w1=w1, b1=b1, w2=w2, b2=b2, w3=w3, b3=b3, wo=wo, bo=bo)


def pad_params(params, w_dtype=jnp.bfloat16):
    """Prepare kernel parameters (done once, outside the hot path):
      * hidden dims zero-padded up to 128 lanes (padded columns stay 0 through
        the ReLU chain, so the math is exact),
      * input dim of w1 and output dim of wo are left UNPADDED so the streamed
        x / out arrays stay narrow,
      * weights cast to bf16 (MXU operands), biases kept f32 (VPU add).
    """
    def pad_w(w, pad_in, pad_out):
        fi, fo = w.shape
        fip = _round_up(fi, LANE) if pad_in else fi
        fop = _round_up(fo, LANE) if pad_out else fo
        return jnp.zeros((fip, fop), w_dtype).at[:fi, :fo].set(w.astype(w_dtype))

    def pad_b(b, pad_out):
        fo = b.shape[1]
        fop = _round_up(fo, LANE) if pad_out else fo
        return jnp.zeros((1, fop), jnp.float32).at[:, :fo].set(b)

    return dict(
        w1=pad_w(params["w1"], False, True), b1=pad_b(params["b1"], True),
        w2=pad_w(params["w2"], True,  True), b2=pad_b(params["b2"], True),
        w3=pad_w(params["w3"], True,  True), b3=pad_b(params["b3"], True),
        wo=pad_w(params["wo"], True,  False), bo=pad_b(params["bo"], False),
    )


# ---------------------------------------------------------------------------
# Wrapper
# ---------------------------------------------------------------------------
def regression_network_forward(x, padded_params, *, block_batch=4096):
    """Run the fused MLP Pallas kernel.

    x             : (batch, input_size) float32
    padded_params : output of pad_params()
    Returns (batch, output_size) float32.
    """
    batch, input_size = x.shape
    assert padded_params["w1"].shape[0] == input_size
    hp = padded_params["w1"].shape[1]        # padded hidden features (128)
    output_size = padded_params["wo"].shape[1]

    # Batch tile: multiple of 8 sublanes; at least ~4 grid steps for large
    # batches so the "parallel" batch axis can feed both v7x TensorCores,
    # capped at block_batch to bound VMEM.
    tb = min(block_batch, _round_up(max(_cdiv(batch, 4), SUBLANE), SUBLANE))
    grid = (_cdiv(batch, tb),)               # partial last block is masked

    def resident(shape):
        # Full-array block, same block every grid step -> DMA'd once, stays
        # resident in VMEM while batch tiles stream through.
        return pl.BlockSpec(shape, lambda i: (0, 0))

    flops = 2 * batch * (input_size * hp + hp * hp + hp * hp + hp * output_size)
    bytes_accessed = (4 * batch * (input_size + output_size)          # x + out
                      + 2 * (input_size * hp + 2 * hp * hp + hp * output_size)  # bf16 W
                      + 4 * (3 * hp + output_size))                   # f32 biases

    out = pl.pallas_call(
        _mlp_kernel,
        out_shape=jax.ShapeDtypeStruct((batch, output_size), jnp.float32),
        grid=grid,
        in_specs=[
            pl.BlockSpec((tb, input_size), lambda i: (i, 0)),   # x: streamed, narrow
            resident((input_size, hp)), resident((1, hp)),      # fc1
            resident((hp, hp)),         resident((1, hp)),      # fc2
            resident((hp, hp)),         resident((1, hp)),      # fc3
            resident((hp, output_size)), resident((1, output_size)),  # output
        ],
        out_specs=pl.BlockSpec((tb, output_size), lambda i: (i, 0)),  # narrow out
        compiler_params=pltpu.CompilerParams(
            dimension_semantics=("parallel",),   # shard batch across TCs (v7x)
        ),
        cost_estimate=pl.CostEstimate(
            flops=flops, transcendentals=0, bytes_accessed=bytes_accessed),
    )(x,
      padded_params["w1"], padded_params["b1"],
      padded_params["w2"], padded_params["b2"],
      padded_params["w3"], padded_params["b3"],
      padded_params["wo"], padded_params["bo"])

    return out


def reference_forward(x, p):
    """Pure-JAX f32 reference of the same forward pass (for a sanity check)."""
    h = jnp.maximum(x @ p["w1"] + p["b1"], 0.0)
    h = jnp.maximum(h @ p["w2"] + p["b2"], 0.0)
    h = jnp.maximum(h @ p["w3"] + p["b3"], 0.0)
    return h @ p["wo"] + p["bo"]


if __name__ == "__main__":
    # Small shapes consistent with the module: x is (batch, input_size).
    batch, input_size, hidden_size, output_size = 8, 16, 32, 4

    key = jax.random.PRNGKey(0)
    kx, kp = jax.random.split(key)
    x = jax.random.normal(kx, (batch, input_size), jnp.float32)

    params = init_params(kp, input_size, hidden_size, output_size)
    padded_params = pad_params(params)

    out = regression_network_forward(x, padded_params)
    out = jax.block_until_ready(out)

    # Correctness check against the pure-JAX f32 reference.  The kernel does
    # its dots in bf16 (f32 accumulate), so the tolerance is loosened
    # accordingly (values here are O(1), so 5e-2 is generous but safe).
    ref = reference_forward(x, params)
    assert out.shape == (batch, output_size)
    assert jnp.allclose(out, ref, atol=5e-2, rtol=5e-2), "mismatch vs reference"

    print("KERNEL_OK")
</pallas_src>

<mosaic_0001>
module attributes {stable_mosaic.version = 11 : i64} {
  func.func @_mlp_kernel(%arg0: i32, %arg1: memref<8x16xf32, #tpu.memory_space<vmem>>, %arg2: memref<16x128xbf16, #tpu.memory_space<vmem>>, %arg3: memref<1x128xf32, #tpu.memory_space<vmem>>, %arg4: memref<128x128xbf16, #tpu.memory_space<vmem>>, %arg5: memref<1x128xf32, #tpu.memory_space<vmem>>, %arg6: memref<128x128xbf16, #tpu.memory_space<vmem>>, %arg7: memref<1x128xf32, #tpu.memory_space<vmem>>, %arg8: memref<128x4xbf16, #tpu.memory_space<vmem>>, %arg9: memref<1x4xf32, #tpu.memory_space<vmem>>, %arg10: memref<8x4xf32, #tpu.memory_space<vmem>>) attributes {dimension_semantics = [#tpu.dimension_semantics<parallel>], iteration_bounds = array<i64: 1>, scalar_prefetch = 0 : i64, scratch_operands = 0 : i64, tpu.core_type = #tpu.core_type<tc>, window_params = [{transform_indices = @transform_0, window_bounds = array<i64: 8, 16>}, {pipeline_mode = #tpu.pipeline_mode<synchronous>, transform_indices = @transform_1, window_bounds = array<i64: 16, 128>}, {pipeline_mode = #tpu.pipeline_mode<synchronous>, transform_indices = @transform_2, window_bounds = array<i64: 1, 128>}, {pipeline_mode = #tpu.pipeline_mode<synchronous>, transform_indices = @transform_3, window_bounds = array<i64: 128, 128>}, {pipeline_mode = #tpu.pipeline_mode<synchronous>, transform_indices = @transform_4, window_bounds = array<i64: 1, 128>}, {pipeline_mode = #tpu.pipeline_mode<synchronous>, transform_indices = @transform_5, window_bounds = array<i64: 128, 128>}, {pipeline_mode = #tpu.pipeline_mode<synchronous>, transform_indices = @transform_6, window_bounds = array<i64: 1, 128>}, {pipeline_mode = #tpu.pipeline_mode<synchronous>, transform_indices = @transform_7, window_bounds = array<i64: 128, 4>}, {pipeline_mode = #tpu.pipeline_mode<synchronous>, transform_indices = @transform_8, window_bounds = array<i64: 1, 4>}, {transform_indices = @transform_9, window_bounds = array<i64: 8, 4>}]} {
    %c0 = arith.constant 0 : index
    %c0_0 = arith.constant 0 : index
    %0 = vector.load %arg1[%c0, %c0_0] : memref<8x16xf32, #tpu.memory_space<vmem>>, vector<8x16xf32>
    %1 = arith.truncf %0 : vector<8x16xf32> to vector<8x16xbf16>
    %c0_1 = arith.constant 0 : index
    %c0_2 = arith.constant 0 : index
    %2 = vector.load %arg2[%c0_1, %c0_2] : memref<16x128xbf16, #tpu.memory_space<vmem>>, vector<16x128xbf16>
    %cst = arith.constant dense<0.000000e+00> : vector<8x128xf32>
    %3 = tpu.matmul %1, %2, %cst {dimension_numbers = #tpu.dot_dimension_numbers<[1], [0], [0], [1], [0, 0, 1, 1], [], []>} : vector<8x16xbf16>, vector<16x128xbf16>, vector<8x128xf32> -> vector<8x128xf32>
    %c0_3 = arith.constant 0 : index
    %c0_4 = arith.constant 0 : index
    %4 = vector.load %arg3[%c0_3, %c0_4] : memref<1x128xf32, #tpu.memory_space<vmem>>, vector<1x128xf32>
    %5 = vector.broadcast %4 : vector<1x128xf32> to vector<8x128xf32>
    %6 = arith.addf %3, %5 : vector<8x128xf32>
    %cst_5 = arith.constant 0.000000e+00 : f32
    %7 = vector.broadcast %cst_5 : f32 to vector<8x128xf32>
    %8 = arith.maximumf %6, %7 : vector<8x128xf32>
    %9 = arith.truncf %8 : vector<8x128xf32> to vector<8x128xbf16>
    %c0_6 = arith.constant 0 : index
    %c0_7 = arith.constant 0 : index
    %10 = vector.load %arg4[%c0_6, %c0_7] : memref<128x128xbf16, #tpu.memory_space<vmem>>, vector<128x128xbf16>
    %cst_8 = arith.constant dense<0.000000e+00> : vector<8x128xf32>
    %11 = tpu.matmul %9, %10, %cst_8 {dimension_numbers = #tpu.dot_dimension_numbers<[1], [0], [0], [1], [0, 0, 1, 1], [], []>} : vector<8x128xbf16>, vector<128x128xbf16>, vector<8x128xf32> -> vector<8x128xf32>
    %c0_9 = arith.constant 0 : index
    %c0_10 = arith.constant 0 : index
    %12 = vector.load %arg5[%c0_9, %c0_10] : memref<1x128xf32, #tpu.memory_space<vmem>>, vector<1x128xf32>
    %13 = vector.broadcast %12 : vector<1x128xf32> to vector<8x128xf32>
    %14 = arith.addf %11, %13 : vector<8x128xf32>
    %cst_11 = arith.constant 0.000000e+00 : f32
    %15 = vector.broadcast %cst_11 : f32 to vector<8x128xf32>
    %16 = arith.maximumf %14, %15 : vector<8x128xf32>
    %17 = arith.truncf %16 : vector<8x128xf32> to vector<8x128xbf16>
    %c0_12 = arith.constant 0 : index
    %c0_13 = arith.constant 0 : index
    %18 = vector.load %arg6[%c0_12, %c0_13] : memref<128x128xbf16, #tpu.memory_space<vmem>>, vector<128x128xbf16>
    %cst_14 = arith.constant dense<0.000000e+00> : vector<8x128xf32>
    %19 = tpu.matmul %17, %18, %cst_14 {dimension_numbers = #tpu.dot_dimension_numbers<[1], [0], [0], [1], [0, 0, 1, 1], [], []>} : vector<8x128xbf16>, vector<128x128xbf16>, vector<8x128xf32> -> vector<8x128xf32>
    %c0_15 = arith.constant 0 : index
    %c0_16 = arith.constant 0 : index
    %20 = vector.load %arg7[%c0_15, %c0_16] : memref<1x128xf32, #tpu.memory_space<vmem>>, vector<1x128xf32>
    %21 = vector.broadcast %20 : vector<1x128xf32> to vector<8x128xf32>
    %22 = arith.addf %19, %21 : vector<8x128xf32>
    %cst_17 = arith.constant 0.000000e+00 : f32
    %23 = vector.broadcast %cst_17 : f32 to vector<8x128xf32>
    %24 = arith.maximumf %22, %23 : vector<8x128xf32>
    %25 = arith.truncf %24 : vector<8x128xf32> to vector<8x128xbf16>
    %c0_18 = arith.constant 0 : index
    %c0_19 = arith.constant 0 : index
    %26 = vector.load %arg8[%c0_18, %c0_19] : memref<128x4xbf16, #tpu.memory_space<vmem>>, vector<128x4xbf16>
    %cst_20 = arith.constant dense<0.000000e+00> : vector<8x4xf32>
    %27 = tpu.matmul %25, %26, %cst_20 {dimension_numbers = #tpu.dot_dimension_numbers<[1], [0], [0], [1], [0, 0, 1, 1], [], []>} : vector<8x128xbf16>, vector<128x4xbf16>, vector<8x4xf32> -> vector<8x4xf32>
    %c0_21 = arith.constant 0 : index
    %c0_22 = arith.constant 0 : index
    %28 = vector.load %arg9[%c0_21, %c0_22] : memref<1x4xf32, #tpu.memory_space<vmem>>, vector<1x4xf32>
    %29 = vector.broadcast %28 : vector<1x4xf32> to vector<8x4xf32>
    %30 = arith.addf %27, %29 : vector<8x4xf32>
    %c0_23 = arith.constant 0 : index
    %c0_24 = arith.constant 0 : index
    %31 = vector.load %arg10[%c0_23, %c0_24] : memref<8x4xf32, #tpu.memory_space<vmem>>, vector<8x4xf32>
    tpu.vector_store %arg10[%c0_23, %c0_24], %30 {strides = array<i32>} : memref<8x4xf32, #tpu.memory_space<vmem>>, vector<8x4xf32>,
    return
  }
  func.func @transform_0(%arg0: i32) -> (i32, i32) {
    %c0_i32 = arith.constant 0 : i32
    %c0_i32_0 = arith.constant 0 : i32
    return %arg0, %c0_i32 : i32, i32
  }
  func.func @transform_1(%arg0: i32) -> (i32, i32) {
    %c0_i32 = arith.constant 0 : i32
    %c0_i32_0 = arith.constant 0 : i32
    %c0_i32_1 = arith.constant 0 : i32
    return %c0_i32, %c0_i32_0 : i32, i32
  }
  func.func @transform_2(%arg0: i32) -> (i32, i32) {
    %c0_i32 = arith.constant 0 : i32
    %c0_i32_0 = arith.constant 0 : i32
    %c0_i32_1 = arith.constant 0 : i32
    return %c0_i32, %c0_i32_0 : i32, i32
  }
  func.func @transform_3(%arg0: i32) -> (i32, i32) {
    %c0_i32 = arith.constant 0 : i32
    %c0_i32_0 = arith.constant 0 : i32
    %c0_i32_1 = arith.constant 0 : i32
    return %c0_i32, %c0_i32_0 : i32, i32
  }
  func.func @transform_4(%arg0: i32) -> (i32, i32) {
    %c0_i32 = arith.constant 0 : i32
    %c0_i32_0 = arith.constant 0 : i32
    %c0_i32_1 = arith.constant 0 : i32
    return %c0_i32, %c0_i32_0 : i32, i32
  }
  func.func @transform_5(%arg0: i32) -> (i32, i32) {
    %c0_i32 = arith.constant 0 : i32
    %c0_i32_0 = arith.constant 0 : i32
    %c0_i32_1 = arith.constant 0 : i32
    return %c0_i32, %c0_i32_0 : i32, i32
  }
  func.func @transform_6(%arg0: i32) -> (i32, i32) {
    %c0_i32 = arith.constant 0 : i32
    %c0_i32_0 = arith.constant 0 : i32
    %c0_i32_1 = arith.constant 0 : i32
    return %c0_i32, %c0_i32_0 : i32, i32
  }
  func.func @transform_7(%arg0: i32) -> (i32, i32) {
    %c0_i32 = arith.constant 0 : i32
    %c0_i32_0 = arith.constant 0 : i32
    %c0_i32_1 = arith.constant 0 : i32
    return %c0_i32, %c0_i32_0 : i32, i32
  }
  func.func @transform_8(%arg0: i32) -> (i32, i32) {
    %c0_i32 = arith.constant 0 : i32
    %c0_i32_0 = arith.constant 0 : i32
    %c0_i32_1 = arith.constant 0 : i32
    return %c0_i32, %c0_i32_0 : i32, i32
  }
  func.func @transform_9(%arg0: i32) -> (i32, i32) {
    %c0_i32 = arith.constant 0 : i32
    %c0_i32_0 = arith.constant 0 : i32
    return %arg0, %c0_i32 : i32, i32
  }
}

</mosaic_0001>

<llo_original>
// kernel: tpu_custom_call.1
$region0: #{tpu_custom_call.1}
  #allocation0 [shape = 'u32[]', space=smem, size = 0x4, offset = 0x4, fixed_abs, tag = 'smem constant byte address 0x4 - core index']
  #allocation1 [shape = 'u32[72,128]{1,0:T(1,128)}', space=vmem, size = 0x9000, scoped, tag = 'internal scratch']
  %s0 = inlined_call_operand.hbm [shape: f32[8,16], index: 0, kind: input, shape index: {}]
  %s1 = inlined_call_operand.hbm [shape: bf16[16,128], index: 1, kind: input, shape index: {}]
  %s2 = inlined_call_operand.vmem [shape: f32[1,128], index: 2, kind: input, shape index: {}]
  %s3 = inlined_call_operand.vmem [shape: bf16[128,128], index: 3, kind: input, shape index: {}]
  %s4 = inlined_call_operand.vmem [shape: f32[1,128], index: 4, kind: input, shape index: {}]
  %s5 = inlined_call_operand.hbm [shape: bf16[128,128], index: 5, kind: input, shape index: {}]
  %s6 = inlined_call_operand.vmem [shape: f32[1,128], index: 6, kind: input, shape index: {}]
  %s7 = inlined_call_operand.vmem [shape: bf16[128,4], index: 7, kind: input, shape index: {}]
  %s8 = inlined_call_operand.vmem [shape: f32[1,4], index: 8, kind: input, shape index: {}]
  %s9 = inlined_call_operand.vmem [shape: f32[8,4], index: 9, kind: output, shape index: {}]
  %s10 = sld [smem:[#allocation0]]
  $region58: #{tpu_custom_call.1} parent=0
    _
  %s12 = ssub.s32 1, %s10
  %s13 = scalar_select 0, %s12, %s10
  $region1: #{tpu_custom_call.1} parent=0
    #allocation2 [shape = 'u8[4096]{0}', space=vmem, size = 0x1000, scoped, tag = 'input window, operand 0, single buffered']
    #allocation3 [shape = 's32[1]{0}', space=sflag, size = 0x4, scoped, tag = 'scoped memory for tpu_custom_call.1']
    #allocation4 [shape = 'u8[4096]{0}', space=vmem, size = 0x1000, scoped, tag = 'input window, operand 1, single buffered']
    #allocation5 [shape = 's32[1]{0}', space=sflag, size = 0x4, scoped, tag = 'scoped memory for tpu_custom_call.1']
    #allocation6 [shape = 'u8[32768]{0}', space=vmem, size = 0x8000, scoped, tag = 'input window, operand 5, single buffered']
    %14 = vsyncpa [#allocation3], 0
    %15 = vsyncpa [#allocation5], 0
    // Predicated region
    $region2: #{tpu_custom_call.1} parent=1 // pred_check
      _
    $region3: #{tpu_custom_call.1} parent=1 // pred_check_branch
      %17 = sbr.rel (0) target = $region5
    $region4: #{tpu_custom_call.1} parent=1 // pred_region
      %19 = vsyncadd [#allocation3], 0
      %s21 = sshll.u32 %s0, 4
      %s22 = int_to_ptr.hbm [resolvable:$true] %s21
      %s23 = sshll.u32 [#allocation2], 4
      %s24 = int_to_ptr.vmem [resolvable:$true] %s23
      %26 = dma.hbm_to_vmem [thread:$0]  %s22, 128, %s24, [#allocation3]
    $region5: #{tpu_custom_call.1} parent=1 // pred_fallthru
      _
    // Predicated region
    $region6: #{tpu_custom_call.1} parent=1 // pred_check
      _
    $region7: #{tpu_custom_call.1} parent=1 // pred_check_branch
      %28 = sbr.rel (0) target = $region9
    $region8: #{tpu_custom_call.1} parent=1 // pred_region
      %30 = vsyncadd [#allocation5], 0
      %s31 = sshll.u32 %s1, 4
      %s32 = int_to_ptr.hbm [resolvable:$true] %s31
      %s33 = sshll.u32 [#allocation4], 4
      %s34 = int_to_ptr.vmem [resolvable:$true] %s33
      %39 = dma.hbm_to_vmem [thread:$0]  %s32, 128, %s34, [#allocation5], 64, 64, 4
    $region9: #{tpu_custom_call.1} parent=1 // pred_fallthru
      _
    // Predicated region
    $region10: #{tpu_custom_call.1} parent=1 // pred_check
      _
    $region11: #{tpu_custom_call.1} parent=1 // pred_check_branch
      %41 = sbr.rel (0) target = $region13
    $region12: #{tpu_custom_call.1} parent=1 // pred_region
      _
    $region13: #{tpu_custom_call.1} parent=1 // pred_fallthru
      _
    // Predicated region
    $region14: #{tpu_custom_call.1} parent=1 // pred_check
      _
    $region15: #{tpu_custom_call.1} parent=1 // pred_check_branch
      %43 = sbr.rel (0) target = $region17
    $region16: #{tpu_custom_call.1} parent=1 // pred_region
      _
    $region17: #{tpu_custom_call.1} parent=1 // pred_fallthru
      _
    // Predicated region
    $region18: #{tpu_custom_call.1} parent=1 // pred_check
      _
    $region19: #{tpu_custom_call.1} parent=1 // pred_check_branch
      %45 = sbr.rel (0) target = $region21
    $region20: #{tpu_custom_call.1} parent=1 // pred_region
      _
    $region21: #{tpu_custom_call.1} parent=1 // pred_fallthru
      _
    // Predicated region
    $region22: #{tpu_custom_call.1} parent=1 // pred_check
      _
    $region23: #{tpu_custom_call.1} parent=1 // pred_check_branch
      %47 = sbr.rel (0) target = $region25
    $region24: #{tpu_custom_call.1} parent=1 // pred_region
      %49 = vsyncadd [#allocation5], 0
      %s50 = sshll.u32 %s5, 4
      %s51 = int_to_ptr.hbm [resolvable:$true] %s50
      %s52 = sshll.u32 [#allocation6], 4
      %s53 = int_to_ptr.vmem [resolvable:$true] %s52
      %58 = dma.hbm_to_vmem [thread:$0]  %s51, 1024, %s53, [#allocation5], 64, 64, 4
    $region25: #{tpu_custom_call.1} parent=1 // pred_fallthru
      _
    // Predicated region
    $region26: #{tpu_custom_call.1} parent=1 // pred_check
      _
    $region27: #{tpu_custom_call.1} parent=1 // pred_check_branch
      %60 = sbr.rel (0) target = $region29
    $region28: #{tpu_custom_call.1} parent=1 // pred_region
      _
    $region29: #{tpu_custom_call.1} parent=1 // pred_fallthru
      _
    // Predicated region
    $region30: #{tpu_custom_call.1} parent=1 // pred_check
      _
    $region31: #{tpu_custom_call.1} parent=1 // pred_check_branch
      %62 = sbr.rel (0) target = $region33
    $region32: #{tpu_custom_call.1} parent=1 // pred_region
      _
    $region33: #{tpu_custom_call.1} parent=1 // pred_fallthru
      _
    // Predicated region
    $region34: #{tpu_custom_call.1} parent=1 // pred_check
      _
    $region35: #{tpu_custom_call.1} parent=1 // pred_check_branch
      %64 = sbr.rel (0) target = $region37
    $region36: #{tpu_custom_call.1} parent=1 // pred_region
      _
    $region37: #{tpu_custom_call.1} parent=1 // pred_fallthru
      _
    // Predicated region
    $region38: #{tpu_custom_call.1} parent=1 // pred_check
      _
    $region39: #{tpu_custom_call.1} parent=1 // pred_check_branch
      %66 = sbr.rel (0) target = $region41
    $region40: #{tpu_custom_call.1} parent=1 // pred_region
      %68 = dma.done [#allocation3], 128
    $region41: #{tpu_custom_call.1} parent=1 // pred_fallthru
      _
    // Predicated region
    $region42: #{tpu_custom_call.1} parent=1 // pred_check
      _
    $region43: #{tpu_custom_call.1} parent=1 // pred_check_branch
      %70 = sbr.rel (0) target = $region45
    $region44: #{tpu_custom_call.1} parent=1 // pred_region
      %72 = dma.done [#allocation5], 128
    $region45: #{tpu_custom_call.1} parent=1 // pred_fallthru
      _
    // Predicated region
    $region46: #{tpu_custom_call.1} parent=1 // pred_check
      _
    $region47: #{tpu_custom_call.1} parent=1 // pred_check_branch
      %74 = sbr.rel (0) target = $region49
    $region48: #{tpu_custom_call.1} parent=1 // pred_region
      %76 = dma.done [#allocation5], 1024
    $region49: #{tpu_custom_call.1} parent=1 // pred_fallthru
      _
    %v78 = vld [vmem:[#allocation2] sm:$0xff]
    %v79 = vpack.c.bf16 %v78, %v78
    %v80 = vld [vmem:[#allocation4] sm:$0xf]
    %v81 = vld [vmem:[#allocation4 + $0x4] sm:$0xf]
    %v82 = vld [vmem:[%s2] sm:$0x1]
    %v84 = vperm.slane %v82, 0
    %v88 = vunpack.c.l.b16 %v80
    %v89 = vunpack.c.l.b16 %v81
    %v90 = vpack.c.b16 %v89, %v88
    %vm92 = vcmask 130048
    %v94 = vsel %vm92, %v79, 0
    %96 = vmatpush.bf16.msra.mxu0 0
    %97 = vmatpush.bf16.msra.mxu0 0
    %98 = vmatpush.bf16.msra.mxu0 0
    %99 = vmatpush.bf16.msra.mxu0 0
    %100 = vmatpush.bf16.msra.mxu0 0
    %101 = vmatpush.bf16.msra.mxu0 0
    %102 = vmatpush.bf16.msra.mxu0 0
    %103 = vmatpush.bf16.msra.mxu0 %v90
    %104 = vmatmul.bf16.gmra.mxu0 %v94
    %v105 = vpop.f32.mrf.mxu0
    %v106 = vadd.f32 %v84, %v105
    %v107 = vpop.f32.mrf.mxu0
    %108 = vdwg.mxu0
    %v109 = vmax.f32 %v106, 0.0
    %v110 = vpack.c.bf16 %v109, %v109
    %v111 = vld [vmem:[%s3] sm:$0xf]
    %v112 = vld [vmem:[%s3 + $0x4] sm:$0xf]
    %v113 = vld [vmem:[%s3 + $0x8] sm:$0xf]
    %v114 = vld [vmem:[%s3 + $0xc] sm:$0xf]
    %v115 = vld [vmem:[%s3 + $0x10] sm:$0xf]
    %v116 = vld [vmem:[%s3 + $0x14] sm:$0xf]
    %v117 = vld [vmem:[%s3 + $0x18] sm:$0xf]
    %v118 = vld [vmem:[%s3 + $0x1c] sm:$0xf]
    %v119 = vld [vmem:[%s3 + $0x20] sm:$0xf]
    %v120 = vld [vmem:[%s3 + $0x24] sm:$0xf]
    %v121 = vld [vmem:[%s3 + $0x28] sm:$0xf]
    %v122 = vld [vmem:[%s3 + $0x2c] sm:$0xf]
    %v123 = vld [vmem:[%s3 + $0x30] sm:$0xf]
    %v124 = vld [vmem:[%s3 + $0x34] sm:$0xf]
    %v125 = vld [vmem:[%s3 + $0x38] sm:$0xf]
    %v126 = vld [vmem:[%s3 + $0x3c] sm:$0xf]
    %v127 = vld [vmem:[%s4] sm:$0x1]
    %v129 = vperm.slane %v127, 0
    %v147 = vunpack.c.l.b16 %v111
    %v148 = vunpack.c.l.b16 %v112
    %v149 = vunpack.c.l.b16 %v113
    %v150 = vunpack.c.l.b16 %v114
    %v151 = vunpack.c.l.b16 %v115
    %v152 = vunpack.c.l.b16 %v116
    %v153 = vunpack.c.l.b16 %v117
    %v154 = vunpack.c.l.b16 %v118
    %v155 = vunpack.c.l.b16 %v119
    %v156 = vunpack.c.l.b16 %v120
    %v157 = vunpack.c.l.b16 %v121
    %v158 = vunpack.c.l.b16 %v122
    %v159 = vunpack.c.l.b16 %v123
    %v160 = vunpack.c.l.b16 %v124
    %v161 = vunpack.c.l.b16 %v125
    %v162 = vunpack.c.l.b16 %v126
    %v163 = vpack.c.b16 %v148, %v147
    %v164 = vpack.c.b16 %v150, %v149
    %v165 = vpack.c.b16 %v152, %v151
    %v166 = vpack.c.b16 %v154, %v153
    %v167 = vpack.c.b16 %v156, %v155
    %v168 = vpack.c.b16 %v158, %v157
    %v169 = vpack.c.b16 %v160, %v159
    %v170 = vpack.c.b16 %v162, %v161
    %179 = vmatpush.bf16.msra.mxu0 %v170
    %180 = vmatpush.bf16.msra.mxu0 %v169
    %181 = vmatpush.bf16.msra.mxu0 %v168
    %182 = vmatpush.bf16.msra.mxu0 %v167
    %183 = vmatpush.bf16.msra.mxu0 %v166
    %184 = vmatpush.bf16.msra.mxu0 %v165
    %185 = vmatpush.bf16.msra.mxu0 %v164
    %186 = vmatpush.bf16.msra.mxu0 %v163
    %187 = vmatmul.bf16.gmra.mxu0 %v110
    %v188 = vpop.f32.mrf.mxu0
    %v189 = vadd.f32 %v129, %v188
    %v190 = vpop.f32.mrf.mxu0
    %191 = vdwg.mxu0
    %v192 = vmax.f32 %v189, 0.0
    %v193 = vpack.c.bf16 %v192, %v192
    %v194 = vld [vmem:[#allocation6] sm:$0xf]
    %v195 = vld [vmem:[#allocation6 + $0x4] sm:$0xf]
    %v196 = vld [vmem:[#allocation6 + $0x8] sm:$0xf]
    %v197 = vld [vmem:[#allocation6 + $0xc] sm:$0xf]
    %v198 = vld [vmem:[#allocation6 + $0x10] sm:$0xf]
    %v199 = vld [vmem:[#allocation6 + $0x14] sm:$0xf]
    %v200 = vld [vmem:[#allocation6 + $0x18] sm:$0xf]
    %v201 = vld [vmem:[#allocation6 + $0x1c] sm:$0xf]
    %v202 = vld [vmem:[#allocation6 + $0x20] sm:$0xf]
    %v203 = vld [vmem:[#allocation6 + $0x24] sm:$0xf]
    %v204 = vld [vmem:[#allocation6 + $0x28] sm:$0xf]
    %v205 = vld [vmem:[#allocation6 + $0x2c] sm:$0xf]
    %v206 = vld [vmem:[#allocation6 + $0x30] sm:$0xf]
    %v207 = vld [vmem:[#allocation6 + $0x34] sm:$0xf]
    %v208 = vld [vmem:[#allocation6 + $0x38] sm:$0xf]
    %v209 = vld [vmem:[#allocation6 + $0x3c] sm:$0xf]
    %v210 = vld [vmem:[%s6] sm:$0x1]
    %v212 = vperm.slane %v210, 0
    %v230 = vunpack.c.l.b16 %v194
    %v231 = vunpack.c.l.b16 %v195
    %v232 = vunpack.c.l.b16 %v196
    %v233 = vunpack.c.l.b16 %v197
    %v234 = vunpack.c.l.b16 %v198
    %v235 = vunpack.c.l.b16 %v199
    %v236 = vunpack.c.l.b16 %v200
    %v237 = vunpack.c.l.b16 %v201
    %v238 = vunpack.c.l.b16 %v202
    %v239 = vunpack.c.l.b16 %v203
    %v240 = vunpack.c.l.b16 %v204
    %v241 = vunpack.c.l.b16 %v205
    %v242 = vunpack.c.l.b16 %v206
    %v243 = vunpack.c.l.b16 %v207
    %v244 = vunpack.c.l.b16 %v208
    %v245 = vunpack.c.l.b16 %v209
    %v246 = vpack.c.b16 %v231, %v230
    %v247 = vpack.c.b16 %v233, %v232
    %v248 = vpack.c.b16 %v235, %v234
    %v249 = vpack.c.b16 %v237, %v236
    %v250 = vpack.c.b16 %v239, %v238
    %v251 = vpack.c.b16 %v241, %v240
    %v252 = vpack.c.b16 %v243, %v242
    %v253 = vpack.c.b16 %v245, %v244
    %262 = vmatpush.bf16.msra.mxu0 %v253
    %263 = vmatpush.bf16.msra.mxu0 %v252
    %264 = vmatpush.bf16.msra.mxu0 %v251
    %265 = vmatpush.bf16.msra.mxu0 %v250
    %266 = vmatpush.bf16.msra.mxu0 %v249
    %267 = vmatpush.bf16.msra.mxu0 %v248
    %268 = vmatpush.bf16.msra.mxu0 %v247
    %269 = vmatpush.bf16.msra.mxu0 %v246
    %270 = vmatmul.bf16.gmra.mxu0 %v193
    %v271 = vpop.f32.mrf.mxu0
    %v272 = vadd.f32 %v212, %v271
    %v273 = vpop.f32.mrf.mxu0
    %274 = vdwg.mxu0
    %v275 = vmax.f32 %v272, 0.0
    %v276 = vpack.c.bf16 %v275, %v275
    %v277 = vld [vmem:[%s7] sm:$0xf]
    %v278 = vld [vmem:[%s7 + $0x4] sm:$0xf]
    %v279 = vld [vmem:[%s7 + $0x8] sm:$0xf]
    %v280 = vld [vmem:[%s7 + $0xc] sm:$0xf]
    %v281 = vld [vmem:[%s7 + $0x10] sm:$0xf]
    %v282 = vld [vmem:[%s7 + $0x14] sm:$0xf]
    %v283 = vld [vmem:[%s7 + $0x18] sm:$0xf]
    %v284 = vld [vmem:[%s7 + $0x1c] sm:$0xf]
    %v285 = vld [vmem:[%s7 + $0x20] sm:$0xf]
    %v286 = vld [vmem:[%s7 + $0x24] sm:$0xf]
    %v287 = vld [vmem:[%s7 + $0x28] sm:$0xf]
    %v288 = vld [vmem:[%s7 + $0x2c] sm:$0xf]
    %v289 = vld [vmem:[%s7 + $0x30] sm:$0xf]
    %v290 = vld [vmem:[%s7 + $0x34] sm:$0xf]
    %v291 = vld [vmem:[%s7 + $0x38] sm:$0xf]
    %v292 = vld [vmem:[%s7 + $0x3c] sm:$0xf]
    %v293 = vld [vmem:[%s8] sm:$0x1]
    %v295 = vperm.slane %v293, 0
    %v313 = vunpack.c.l.b16 %v277
    %v314 = vunpack.c.l.b16 %v278
    %v315 = vunpack.c.l.b16 %v279
    %v316 = vunpack.c.l.b16 %v280
    %v317 = vunpack.c.l.b16 %v281
    %v318 = vunpack.c.l.b16 %v282
    %v319 = vunpack.c.l.b16 %v283
    %v320 = vunpack.c.l.b16 %v284
    %v321 = vunpack.c.l.b16 %v285
    %v322 = vunpack.c.l.b16 %v286
    %v323 = vunpack.c.l.b16 %v287
    %v324 = vunpack.c.l.b16 %v288
    %v325 = vunpack.c.l.b16 %v289
    %v326 = vunpack.c.l.b16 %v290
    %v327 = vunpack.c.l.b16 %v291
    %v328 = vunpack.c.l.b16 %v292
    %v329 = vpack.c.b16 %v314, %v313
    %v330 = vpack.c.b16 %v316, %v315
    %v331 = vpack.c.b16 %v318, %v317
    %v332 = vpack.c.b16 %v320, %v319
    %v333 = vpack.c.b16 %v322, %v321
    %v334 = vpack.c.b16 %v324, %v323
    %v335 = vpack.c.b16 %v326, %v325
    %v336 = vpack.c.b16 %v328, %v327
    %345 = vmatpush.bf16.msra.mxu0 %v336
    %346 = vmatpush.bf16.msra.mxu0 %v335
    %347 = vmatpush.bf16.msra.mxu0 %v334
    %348 = vmatpush.bf16.msra.mxu0 %v333
    %349 = vmatpush.bf16.msra.mxu0 %v332
    %350 = vmatpush.bf16.msra.mxu0 %v331
    %351 = vmatpush.bf16.msra.mxu0 %v330
    %352 = vmatpush.bf16.msra.mxu0 %v329
    %353 = vmatmul.bf16.gmra.mxu0 %v276
    %v354 = vpop.f32.mrf.mxu0
    %v355 = vadd.f32 %v295, %v354
    %v356 = vpop.f32.mrf.mxu0
    %357 = vdwg.mxu0
    %vm358 = vcmask 31744
    %359 = vst.msk [vmem:[%s9] sm:$0xff] %vm358, %v355
    // Predicated region
    $region50: #{tpu_custom_call.1} parent=1 // pred_check
      _
    $region51: #{tpu_custom_call.1} parent=1 // pred_check_branch
      %361 = sbr.rel (0) target = $region53
    $region52: #{tpu_custom_call.1} parent=1 // pred_region
      _
    $region53: #{tpu_custom_call.1} parent=1 // pred_fallthru
      _
    // Predicated region
    $region54: #{tpu_custom_call.1} parent=1 // pred_check
      _
    $region55: #{tpu_custom_call.1} parent=1 // pred_check_branch
      %363 = sbr.rel (0) target = $region57
    $region56: #{tpu_custom_call.1} parent=1 // pred_region
      _
    $region57: #{tpu_custom_call.1} parent=1 // pred_fallthru
      _
    %364 = vsyncpa [#allocation3], 1
    %365 = vsyncpa [#allocation5], 1

</llo_original>
